<compile_context>
chip_gen: v5e
topology: v5e:2x2
jax: 0.10.0
libtpu: 0.0.40
codegen_flags: <defaults>
</compile_context>

<pallas_src>
import functools

import jax
import jax.numpy as jnp
from jax import lax
from jax.experimental import pallas as pl
from jax.experimental.pallas import tpu as pltpu


def block_kernel(x_ref, wqkv_ref, wo_ref, bo_ref,
                 g1_ref, be1_ref, g2_ref, be2_ref,
                 w1_ref, bf1_ref, w2_ref, bf2_ref,
                 out_ref, attn_ref, *, num_heads):
    x = x_ref[...]                               # (T, C) f32
    T, C = x.shape
    hs = C // num_heads
    eps = 1e-5

    # ---- LayerNorm 1 (f32, VPU) ----
    mu = jnp.mean(x, axis=-1, keepdims=True)
    var = jnp.mean((x - mu) ** 2, axis=-1, keepdims=True)
    h1 = (x - mu) * lax.rsqrt(var + eps) * g1_ref[...] + be1_ref[...]

    # ---- Fused QKV projection: one wide bf16 matmul on the MXU ----
    # NOTE: attention scale (C**-0.5, matching the PyTorch module) is already
    # folded into the Q columns of wqkv in the wrapper.
    qkv = jnp.dot(h1.astype(jnp.bfloat16), wqkv_ref[...],
                  preferred_element_type=jnp.float32)          # (T, 3C) f32
    qkv_bf = qkv.astype(jnp.bfloat16)                          # single cast, reused below

    # ---- Causal mask, built once (additive form; every row has >=1 valid entry) ----
    row = lax.broadcasted_iota(jnp.int32, (T, T), 0)
    col = lax.broadcasted_iota(jnp.int32, (T, T), 1)
    mask_bias = jnp.where(col <= row, jnp.float32(0.0), jnp.float32(-1e30))

    # ---- Per-head causal attention; head outputs written to a (T, C) bf16 scratch ----
    for h in range(num_heads):                    # static unroll over heads
        q = qkv_bf[:, h * hs:(h + 1) * hs]
        k = qkv_bf[:, C + h * hs:C + (h + 1) * hs]
        v = qkv_bf[:, 2 * C + h * hs:2 * C + (h + 1) * hs]
        s = jnp.dot(q, k.T, preferred_element_type=jnp.float32) + mask_bias
        m = jnp.max(s, axis=-1, keepdims=True)
        e = jnp.exp(s - m)
        p = e * pl.reciprocal(jnp.sum(e, axis=-1, keepdims=True), approx=True)
        head_out = jnp.dot(p.astype(jnp.bfloat16), v,
                           preferred_element_type=jnp.float32)              # (T, hs)
        attn_ref[:, h * hs:(h + 1) * hs] = head_out.astype(jnp.bfloat16)

    # ---- Output projection: ONE wide (T,C)x(C,C) bf16 matmul, K=C accumulated on MXU ----
    sa = jnp.dot(attn_ref[...], wo_ref[...], preferred_element_type=jnp.float32)
    x1 = x + sa + bo_ref[...]                     # residual 1 (+ proj bias, added once)

    # ---- LayerNorm 2 (f32) ----
    mu2 = jnp.mean(x1, axis=-1, keepdims=True)
    var2 = jnp.mean((x1 - mu2) ** 2, axis=-1, keepdims=True)
    h2 = (x1 - mu2) * lax.rsqrt(var2 + eps) * g2_ref[...] + be2_ref[...]

    # ---- FeedForward: Linear(C,4C) -> ReLU -> Linear(4C,C), bf16 matmuls / f32 acc ----
    ff = jnp.dot(h2.astype(jnp.bfloat16), w1_ref[...],
                 preferred_element_type=jnp.float32) + bf1_ref[...]
    ff = jnp.maximum(ff, 0.0)
    ff = jnp.dot(ff.astype(jnp.bfloat16), w2_ref[...],
                 preferred_element_type=jnp.float32) + bf2_ref[...]

    out_ref[...] = x1 + ff                        # residual 2


def block_forward(x, params, num_heads):
    B, T, C = x.shape
    H = num_heads
    hs = C // H
    scale = C ** -0.5                             # PyTorch module scales by n_embd**-0.5

    # Fuse per-head q/k/v weights into one (C, 3C) bf16 matrix, columns ordered
    # [q heads | k heads | v heads]; bake the attention scale into the Q columns.
    wq = jnp.transpose(params["wq"], (1, 0, 2)).reshape(C, C) * scale
    wk = jnp.transpose(params["wk"], (1, 0, 2)).reshape(C, C)
    wv = jnp.transpose(params["wv"], (1, 0, 2)).reshape(C, C)
    wqkv = jnp.concatenate([wq, wk, wv], axis=1).astype(jnp.bfloat16)   # (C, 3C)
    wo = params["wo"].astype(jnp.bfloat16)                              # (C, C)
    w1 = params["w1"].astype(jnp.bfloat16)                              # (C, 4C)
    w2 = params["w2"].astype(jnp.bfloat16)                              # (4C, C)

    # Weights / biases: whole-array resident in VMEM, single-buffered (no pipelining).
    def vmem_full():
        return pl.BlockSpec(memory_space=pltpu.MemorySpace.VMEM)

    in_specs = [
        pl.BlockSpec((pl.Squeezed(), T, C), lambda b: (b, 0, 0)),   # x: one seq / grid step
        vmem_full(),   # wqkv (bf16)
        vmem_full(),   # wo   (bf16)
        vmem_full(),   # bo   (f32)
        vmem_full(),   # ln1 gamma
        vmem_full(),   # ln1 beta
        vmem_full(),   # ln2 gamma
        vmem_full(),   # ln2 beta
        vmem_full(),   # ff w1 (bf16)
        vmem_full(),   # ff b1
        vmem_full(),   # ff w2 (bf16)
        vmem_full(),   # ff b2
    ]
    out_spec = pl.BlockSpec((pl.Squeezed(), T, C), lambda b: (b, 0, 0))

    # ---- Cost estimate (helps XLA scheduling around the call) ----
    flops = (2 * B * T * C * 3 * C                 # fused qkv projection
             + 4 * B * T * T * C                   # scores + p@v over all heads
             + 2 * B * T * C * C                   # output projection
             + 16 * B * T * C * C)                 # feedforward (two C<->4C matmuls)
    transcendentals = B * H * T * T                # softmax exp
    param_bytes = (wqkv.size + wo.size + w1.size + w2.size) * 2 + (
        params["bo"].size + params["g1"].size + params["be1"].size
        + params["g2"].size + params["be2"].size
        + params["bf1"].size + params["bf2"].size) * 4
    bytes_accessed = 2 * x.size * 4 + param_bytes
    cost = pl.CostEstimate(flops=int(flops),
                           transcendentals=int(transcendentals),
                           bytes_accessed=int(bytes_accessed))

    # ---- VMEM budget: exact byte sum + headroom, capped per generation ----
    block_bytes = T * C * 4
    io_bytes = 2 * 2 * block_bytes                 # x + out, double-buffered by BlockSpec
    scratch_bytes = T * C * 2                      # (T, C) bf16 attention scratch
    interm_bytes = (T * 3 * C * 4                  # qkv f32
                    + T * 3 * C * 2                # qkv bf16
                    + 3 * T * C * 4                # h1 / x1 / h2 live f32
                    + 2 * T * T * 4                # scores + mask bias
                    + T * 4 * C * 4                # FF hidden f32
                    + T * C * 4)                   # sa f32
    est_vmem = param_bytes + io_bytes + scratch_bytes + interm_bytes
    try:
        vmem_cap = int(pltpu.get_tpu_info().vmem_capacity_bytes)
    except Exception:
        vmem_cap = 64 * 1024 * 1024                # conservative (v7x-sized) fallback
    vmem_limit = int(min(est_vmem + 4 * 1024 * 1024, (vmem_cap * 7) // 8))

    kernel = functools.partial(block_kernel, num_heads=H)
    return pl.pallas_call(
        kernel,
        out_shape=jax.ShapeDtypeStruct((B, T, C), jnp.float32),
        grid_spec=pltpu.PrefetchScalarGridSpec(
            num_scalar_prefetch=0,
            grid=(B,),
            in_specs=in_specs,
            out_specs=out_spec,
            scratch_shapes=[pltpu.VMEM((T, C), jnp.bfloat16)],   # per-head outputs
        ),
        compiler_params=pltpu.CompilerParams(
            dimension_semantics=("parallel",),    # B>=2 feeds both v7x TensorCores
            vmem_limit_bytes=vmem_limit,
        ),
        cost_estimate=cost,
    )(x, wqkv, wo, params["bo"], params["g1"], params["be1"],
      params["g2"], params["be2"], w1, params["bf1"], w2, params["bf2"])


def block_reference(x, p):
    """Pure-JAX f32 reference of the PyTorch Block.forward (dropout = identity)."""
    eps = 1e-5
    B, T, C = x.shape
    H = p["wq"].shape[0]

    def ln(z, g, b):
        mu = jnp.mean(z, axis=-1, keepdims=True)
        var = jnp.mean((z - mu) ** 2, axis=-1, keepdims=True)
        return (z - mu) / jnp.sqrt(var + eps) * g + b

    h1 = ln(x, p["g1"][0], p["be1"][0])
    causal = jnp.tril(jnp.ones((T, T), dtype=bool))
    outs = []
    for h in range(H):
        q = h1 @ p["wq"][h]
        k = h1 @ p["wk"][h]
        v = h1 @ p["wv"][h]
        s = q @ jnp.swapaxes(k, -2, -1) * (C ** -0.5)
        s = jnp.where(causal, s, -jnp.inf)
        outs.append(jax.nn.softmax(s, axis=-1) @ v)
    sa = jnp.concatenate(outs, axis=-1) @ p["wo"] + p["bo"][0]
    x1 = x + sa
    h2 = ln(x1, p["g2"][0], p["be2"][0])
    ff = jnp.maximum(h2 @ p["w1"] + p["bf1"][0], 0.0) @ p["w2"] + p["bf2"][0]
    return x1 + ff


def make_params(key, n_embd, head_num):
    hs = n_embd // head_num
    ks = jax.random.split(key, 10)
    s = 0.05
    return {
        "wq": jax.random.normal(ks[0], (head_num, n_embd, hs), jnp.float32) * s,
        "wk": jax.random.normal(ks[1], (head_num, n_embd, hs), jnp.float32) * s,
        "wv": jax.random.normal(ks[2], (head_num, n_embd, hs), jnp.float32) * s,
        "wo": jax.random.normal(ks[3], (n_embd, n_embd), jnp.float32) * s,
        "bo": jax.random.normal(ks[4], (1, n_embd), jnp.float32) * s,
        "g1": 1.0 + jax.random.normal(ks[5], (1, n_embd), jnp.float32) * 0.01,
        "be1": jax.random.normal(ks[6], (1, n_embd), jnp.float32) * 0.01,
        "g2": 1.0 + jax.random.normal(ks[7], (1, n_embd), jnp.float32) * 0.01,
        "be2": jax.random.normal(ks[8], (1, n_embd), jnp.float32) * 0.01,
        "w1": jax.random.normal(ks[9], (n_embd, 4 * n_embd), jnp.float32) * s,
        "bf1": jnp.zeros((1, 4 * n_embd), jnp.float32),
        "w2": jax.random.normal(jax.random.fold_in(key, 99), (4 * n_embd, n_embd), jnp.float32) * s,
        "bf2": jnp.zeros((1, n_embd), jnp.float32),
    }


if __name__ == "__main__":
    B, T, n_embd, head_num = 2, 8, 32, 4
    key = jax.random.PRNGKey(0)
    kx, kp = jax.random.split(key)
    x = jax.random.normal(kx, (B, T, n_embd), jnp.float32)
    params = make_params(kp, n_embd, head_num)

    out = block_forward(x, params, head_num)
    out = jax.block_until_ready(out)

    ref = block_reference(x, params)
    assert out.shape == (B, T, n_embd)
    max_err = float(jnp.max(jnp.abs(out - ref)))
    # bf16 matmul operands (f32 accumulation) + approx softmax reciprocal
    # => loosened tolerance vs the pure-f32 reference
    assert jnp.allclose(out, ref, atol=2e-2, rtol=2e-2), f"mismatch vs reference (max |err|={max_err})"
    print("KERNEL_OK")
</pallas_src>

<mosaic_0001>
module attributes {stable_mosaic.version = 11 : i64} {
  func.func @block_kernel(%arg0: i32, %arg1: memref<1x8x32xf32, #tpu.memory_space<vmem>>, %arg2: memref<32x96xbf16, #tpu.memory_space<vmem>>, %arg3: memref<32x32xbf16, #tpu.memory_space<vmem>>, %arg4: memref<1x32xf32, #tpu.memory_space<vmem>>, %arg5: memref<1x32xf32, #tpu.memory_space<vmem>>, %arg6: memref<1x32xf32, #tpu.memory_space<vmem>>, %arg7: memref<1x32xf32, #tpu.memory_space<vmem>>, %arg8: memref<1x32xf32, #tpu.memory_space<vmem>>, %arg9: memref<32x128xbf16, #tpu.memory_space<vmem>>, %arg10: memref<1x128xf32, #tpu.memory_space<vmem>>, %arg11: memref<128x32xbf16, #tpu.memory_space<vmem>>, %arg12: memref<1x32xf32, #tpu.memory_space<vmem>>, %arg13: memref<1x8x32xf32, #tpu.memory_space<vmem>>, %arg14: memref<8x32xbf16, #tpu.memory_space<vmem>>) attributes {dimension_semantics = [#tpu.dimension_semantics<parallel>], iteration_bounds = array<i64: 2>, scalar_prefetch = 0 : i64, scratch_operands = 1 : i64, tpu.core_type = #tpu.core_type<tc>, window_params = [{transform_indices = @transform_0, window_bounds = array<i64: 1, 8, 32>}, {pipeline_mode = #tpu.pipeline_mode<synchronous>, transform_indices = @transform_1, window_bounds = array<i64: 32, 96>}, {pipeline_mode = #tpu.pipeline_mode<synchronous>, transform_indices = @transform_2, window_bounds = array<i64: 32, 32>}, {pipeline_mode = #tpu.pipeline_mode<synchronous>, transform_indices = @transform_3, window_bounds = array<i64: 1, 32>}, {pipeline_mode = #tpu.pipeline_mode<synchronous>, transform_indices = @transform_4, window_bounds = array<i64: 1, 32>}, {pipeline_mode = #tpu.pipeline_mode<synchronous>, transform_indices = @transform_5, window_bounds = array<i64: 1, 32>}, {pipeline_mode = #tpu.pipeline_mode<synchronous>, transform_indices = @transform_6, window_bounds = array<i64: 1, 32>}, {pipeline_mode = #tpu.pipeline_mode<synchronous>, transform_indices = @transform_7, window_bounds = array<i64: 1, 32>}, {pipeline_mode = #tpu.pipeline_mode<synchronous>, transform_indices = @transform_8, window_bounds = array<i64: 32, 128>}, {pipeline_mode = #tpu.pipeline_mode<synchronous>, transform_indices = @transform_9, window_bounds = array<i64: 1, 128>}, {pipeline_mode = #tpu.pipeline_mode<synchronous>, transform_indices = @transform_10, window_bounds = array<i64: 128, 32>}, {pipeline_mode = #tpu.pipeline_mode<synchronous>, transform_indices = @transform_11, window_bounds = array<i64: 1, 32>}, {transform_indices = @transform_12, window_bounds = array<i64: 1, 8, 32>}]} {
    %c0 = arith.constant 0 : index
    %c0_0 = arith.constant 0 : index
    %c0_1 = arith.constant 0 : index
    %0 = vector.load %arg1[%c0, %c0_0, %c0_1] : memref<1x8x32xf32, #tpu.memory_space<vmem>>, vector<1x8x32xf32>
    %1 = vector.shape_cast %0 : vector<1x8x32xf32> to vector<8x32xf32>
    %cst = arith.constant dense<0.000000e+00> : vector<8xf32>
    %2 = vector.multi_reduction <add>, %1, %cst [1] : vector<8x32xf32> to vector<8xf32>
    %3 = vector.shape_cast %2 : vector<8xf32> to vector<8x1xf32>
    %cst_2 = arith.constant 3.200000e+01 : f32
    %4 = vector.broadcast %cst_2 : f32 to vector<8x1xf32>
    %5 = arith.divf %3, %4 : vector<8x1xf32>
    %6 = vector.broadcast %5 : vector<8x1xf32> to vector<8x32xf32>
    %7 = arith.subf %1, %6 : vector<8x32xf32>
    %8 = arith.mulf %7, %7 : vector<8x32xf32>
    %cst_3 = arith.constant dense<0.000000e+00> : vector<8xf32>
    %9 = vector.multi_reduction <add>, %8, %cst_3 [1] : vector<8x32xf32> to vector<8xf32>
    %10 = vector.shape_cast %9 : vector<8xf32> to vector<8x1xf32>
    %cst_4 = arith.constant 3.200000e+01 : f32
    %11 = vector.broadcast %cst_4 : f32 to vector<8x1xf32>
    %12 = arith.divf %10, %11 : vector<8x1xf32>
    %13 = vector.broadcast %5 : vector<8x1xf32> to vector<8x32xf32>
    %14 = arith.subf %1, %13 : vector<8x32xf32>
    %cst_5 = arith.constant 9.99999974E-6 : f32
    %15 = vector.broadcast %cst_5 : f32 to vector<8x1xf32>
    %16 = arith.addf %12, %15 : vector<8x1xf32>
    %17 = math.rsqrt %16 : vector<8x1xf32>
    %18 = vector.broadcast %17 : vector<8x1xf32> to vector<8x32xf32>
    %19 = arith.mulf %14, %18 : vector<8x32xf32>
    %c0_6 = arith.constant 0 : index
    %c0_7 = arith.constant 0 : index
    %20 = vector.load %arg5[%c0_6, %c0_7] : memref<1x32xf32, #tpu.memory_space<vmem>>, vector<1x32xf32>
    %21 = vector.broadcast %20 : vector<1x32xf32> to vector<8x32xf32>
    %22 = arith.mulf %19, %21 : vector<8x32xf32>
    %c0_8 = arith.constant 0 : index
    %c0_9 = arith.constant 0 : index
    %23 = vector.load %arg6[%c0_8, %c0_9] : memref<1x32xf32, #tpu.memory_space<vmem>>, vector<1x32xf32>
    %24 = vector.broadcast %23 : vector<1x32xf32> to vector<8x32xf32>
    %25 = arith.addf %22, %24 : vector<8x32xf32>
    %26 = arith.truncf %25 : vector<8x32xf32> to vector<8x32xbf16>
    %c0_10 = arith.constant 0 : index
    %c0_11 = arith.constant 0 : index
    %27 = vector.load %arg2[%c0_10, %c0_11] : memref<32x96xbf16, #tpu.memory_space<vmem>>, vector<32x96xbf16>
    %cst_12 = arith.constant dense<0.000000e+00> : vector<8x96xf32>
    %28 = tpu.matmul %26, %27, %cst_12 {dimension_numbers = #tpu.dot_dimension_numbers<[1], [0], [0], [1], [0, 0, 1, 1], [], []>} : vector<8x32xbf16>, vector<32x96xbf16>, vector<8x96xf32> -> vector<8x96xf32>
    %29 = arith.truncf %28 : vector<8x96xf32> to vector<8x96xbf16>
    %30 = tpu.iota {dimensions = array<i32: 0>} : vector<8x8xi32>
    %31 = tpu.iota {dimensions = array<i32: 1>} : vector<8x8xi32>
    %32 = arith.cmpi sle, %31, %30 : vector<8x8xi32>
    %cst_13 = arith.constant 0.000000e+00 : f32
    %cst_14 = arith.constant -1.000000e+30 : f32
    %33 = vector.broadcast %cst_13 : f32 to vector<8x8xf32>
    %34 = vector.broadcast %cst_14 : f32 to vector<8x8xf32>
    %35 = arith.select %32, %33, %34 : vector<8x8xi1>, vector<8x8xf32>
    %36 = vector.extract_strided_slice %29 {offsets = [0, 0], sizes = [8, 8], strides = [1, 1]} : vector<8x96xbf16> to vector<8x8xbf16>
    %37 = vector.extract_strided_slice %29 {offsets = [0, 32], sizes = [8, 8], strides = [1, 1]} : vector<8x96xbf16> to vector<8x8xbf16>
    %38 = vector.extract_strided_slice %29 {offsets = [0, 64], sizes = [8, 8], strides = [1, 1]} : vector<8x96xbf16> to vector<8x8xbf16>
    %39 = tpu.transpose %37, [1, 0] : vector<8x8xbf16> -> vector<8x8xbf16>
    %cst_15 = arith.constant dense<0.000000e+00> : vector<8x8xf32>
    %40 = tpu.matmul %36, %39, %cst_15 {dimension_numbers = #tpu.dot_dimension_numbers<[1], [0], [0], [1], [0, 0, 1, 1], [], []>} : vector<8x8xbf16>, vector<8x8xbf16>, vector<8x8xf32> -> vector<8x8xf32>
    %41 = arith.addf %40, %35 : vector<8x8xf32>
    %cst_16 = arith.constant dense<0xFF800000> : vector<8xf32>
    %42 = vector.multi_reduction <maximumf>, %41, %cst_16 [1] : vector<8x8xf32> to vector<8xf32>
    %43 = vector.shape_cast %42 : vector<8xf32> to vector<8x1xf32>
    %44 = vector.broadcast %43 : vector<8x1xf32> to vector<8x8xf32>
    %45 = arith.subf %41, %44 : vector<8x8xf32>
    %46 = math.exp %45 : vector<8x8xf32>
    %cst_17 = arith.constant dense<0.000000e+00> : vector<8xf32>
    %47 = vector.multi_reduction <add>, %46, %cst_17 [1] : vector<8x8xf32> to vector<8xf32>
    %48 = vector.shape_cast %47 : vector<8xf32> to vector<8x1xf32>
    %49 = tpu.reciprocal %48 {approx = true} : vector<8x1xf32> -> vector<8x1xf32>
    %50 = vector.broadcast %49 : vector<8x1xf32> to vector<8x8xf32>
    %51 = arith.mulf %46, %50 : vector<8x8xf32>
    %52 = arith.truncf %51 : vector<8x8xf32> to vector<8x8xbf16>
    %cst_18 = arith.constant dense<0.000000e+00> : vector<8x8xf32>
    %53 = tpu.matmul %52, %38, %cst_18 {dimension_numbers = #tpu.dot_dimension_numbers<[1], [0], [0], [1], [0, 0, 1, 1], [], []>} : vector<8x8xbf16>, vector<8x8xbf16>, vector<8x8xf32> -> vector<8x8xf32>
    %54 = arith.truncf %53 : vector<8x8xf32> to vector<8x8xbf16>
    %c0_19 = arith.constant 0 : index
    %c0_20 = arith.constant 0 : index
    %55 = vector.load %arg14[%c0_19, %c0_20] : memref<8x32xbf16, #tpu.memory_space<vmem>>, vector<8x8xbf16>
    tpu.vector_store %arg14[%c0_19, %c0_20], %54 {strides = array<i32>} : memref<8x32xbf16, #tpu.memory_space<vmem>>, vector<8x8xbf16>,
    %56 = vector.extract_strided_slice %29 {offsets = [0, 8], sizes = [8, 8], strides = [1, 1]} : vector<8x96xbf16> to vector<8x8xbf16>
    %57 = vector.extract_strided_slice %29 {offsets = [0, 40], sizes = [8, 8], strides = [1, 1]} : vector<8x96xbf16> to vector<8x8xbf16>
    %58 = vector.extract_strided_slice %29 {offsets = [0, 72], sizes = [8, 8], strides = [1, 1]} : vector<8x96xbf16> to vector<8x8xbf16>
    %59 = tpu.transpose %57, [1, 0] : vector<8x8xbf16> -> vector<8x8xbf16>
    %cst_21 = arith.constant dense<0.000000e+00> : vector<8x8xf32>
    %60 = tpu.matmul %56, %59, %cst_21 {dimension_numbers = #tpu.dot_dimension_numbers<[1], [0], [0], [1], [0, 0, 1, 1], [], []>} : vector<8x8xbf16>, vector<8x8xbf16>, vector<8x8xf32> -> vector<8x8xf32>
    %61 = arith.addf %60, %35 : vector<8x8xf32>
    %cst_22 = arith.constant dense<0xFF800000> : vector<8xf32>
    %62 = vector.multi_reduction <maximumf>, %61, %cst_22 [1] : vector<8x8xf32> to vector<8xf32>
    %63 = vector.shape_cast %62 : vector<8xf32> to vector<8x1xf32>
    %64 = vector.broadcast %63 : vector<8x1xf32> to vector<8x8xf32>
    %65 = arith.subf %61, %64 : vector<8x8xf32>
    %66 = math.exp %65 : vector<8x8xf32>
    %cst_23 = arith.constant dense<0.000000e+00> : vector<8xf32>
    %67 = vector.multi_reduction <add>, %66, %cst_23 [1] : vector<8x8xf32> to vector<8xf32>
    %68 = vector.shape_cast %67 : vector<8xf32> to vector<8x1xf32>
    %69 = tpu.reciprocal %68 {approx = true} : vector<8x1xf32> -> vector<8x1xf32>
    %70 = vector.broadcast %69 : vector<8x1xf32> to vector<8x8xf32>
    %71 = arith.mulf %66, %70 : vector<8x8xf32>
    %72 = arith.truncf %71 : vector<8x8xf32> to vector<8x8xbf16>
    %cst_24 = arith.constant dense<0.000000e+00> : vector<8x8xf32>
    %73 = tpu.matmul %72, %58, %cst_24 {dimension_numbers = #tpu.dot_dimension_numbers<[1], [0], [0], [1], [0, 0, 1, 1], [], []>} : vector<8x8xbf16>, vector<8x8xbf16>, vector<8x8xf32> -> vector<8x8xf32>
    %74 = arith.truncf %73 : vector<8x8xf32> to vector<8x8xbf16>
    %c0_25 = arith.constant 0 : index
    %c8 = arith.constant 8 : index
    %75 = vector.load %arg14[%c0_25, %c8] : memref<8x32xbf16, #tpu.memory_space<vmem>>, vector<8x8xbf16>
    tpu.vector_store %arg14[%c0_25, %c8], %74 {strides = array<i32>} : memref<8x32xbf16, #tpu.memory_space<vmem>>, vector<8x8xbf16>,
    %76 = vector.extract_strided_slice %29 {offsets = [0, 16], sizes = [8, 8], strides = [1, 1]} : vector<8x96xbf16> to vector<8x8xbf16>
    %77 = vector.extract_strided_slice %29 {offsets = [0, 48], sizes = [8, 8], strides = [1, 1]} : vector<8x96xbf16> to vector<8x8xbf16>
    %78 = vector.extract_strided_slice %29 {offsets = [0, 80], sizes = [8, 8], strides = [1, 1]} : vector<8x96xbf16> to vector<8x8xbf16>
    %79 = tpu.transpose %77, [1, 0] : vector<8x8xbf16> -> vector<8x8xbf16>
    %cst_26 = arith.constant dense<0.000000e+00> : vector<8x8xf32>
    %80 = tpu.matmul %76, %79, %cst_26 {dimension_numbers = #tpu.dot_dimension_numbers<[1], [0], [0], [1], [0, 0, 1, 1], [], []>} : vector<8x8xbf16>, vector<8x8xbf16>, vector<8x8xf32> -> vector<8x8xf32>
    %81 = arith.addf %80, %35 : vector<8x8xf32>
    %cst_27 = arith.constant dense<0xFF800000> : vector<8xf32>
    %82 = vector.multi_reduction <maximumf>, %81, %cst_27 [1] : vector<8x8xf32> to vector<8xf32>
    %83 = vector.shape_cast %82 : vector<8xf32> to vector<8x1xf32>
    %84 = vector.broadcast %83 : vector<8x1xf32> to vector<8x8xf32>
    %85 = arith.subf %81, %84 : vector<8x8xf32>
    %86 = math.exp %85 : vector<8x8xf32>
    %cst_28 = arith.constant dense<0.000000e+00> : vector<8xf32>
    %87 = vector.multi_reduction <add>, %86, %cst_28 [1] : vector<8x8xf32> to vector<8xf32>
    %88 = vector.shape_cast %87 : vector<8xf32> to vector<8x1xf32>
    %89 = tpu.reciprocal %88 {approx = true} : vector<8x1xf32> -> vector<8x1xf32>
    %90 = vector.broadcast %89 : vector<8x1xf32> to vector<8x8xf32>
    %91 = arith.mulf %86, %90 : vector<8x8xf32>
    %92 = arith.truncf %91 : vector<8x8xf32> to vector<8x8xbf16>
    %cst_29 = arith.constant dense<0.000000e+00> : vector<8x8xf32>
    %93 = tpu.matmul %92, %78, %cst_29 {dimension_numbers = #tpu.dot_dimension_numbers<[1], [0], [0], [1], [0, 0, 1, 1], [], []>} : vector<8x8xbf16>, vector<8x8xbf16>, vector<8x8xf32> -> vector<8x8xf32>
    %94 = arith.truncf %93 : vector<8x8xf32> to vector<8x8xbf16>
    %c0_30 = arith.constant 0 : index
    %c16 = arith.constant 16 : index
    %95 = vector.load %arg14[%c0_30, %c16] : memref<8x32xbf16, #tpu.memory_space<vmem>>, vector<8x8xbf16>
    tpu.vector_store %arg14[%c0_30, %c16], %94 {strides = array<i32>} : memref<8x32xbf16, #tpu.memory_space<vmem>>, vector<8x8xbf16>,
    %96 = vector.extract_strided_slice %29 {offsets = [0, 24], sizes = [8, 8], strides = [1, 1]} : vector<8x96xbf16> to vector<8x8xbf16>
    %97 = vector.extract_strided_slice %29 {offsets = [0, 56], sizes = [8, 8], strides = [1, 1]} : vector<8x96xbf16> to vector<8x8xbf16>
    %98 = vector.extract_strided_slice %29 {offsets = [0, 88], sizes = [8, 8], strides = [1, 1]} : vector<8x96xbf16> to vector<8x8xbf16>
    %99 = tpu.transpose %97, [1, 0] : vector<8x8xbf16> -> vector<8x8xbf16>
    %cst_31 = arith.constant dense<0.000000e+00> : vector<8x8xf32>
    %100 = tpu.matmul %96, %99, %cst_31 {dimension_numbers = #tpu.dot_dimension_numbers<[1], [0], [0], [1], [0, 0, 1, 1], [], []>} : vector<8x8xbf16>, vector<8x8xbf16>, vector<8x8xf32> -> vector<8x8xf32>
    %101 = arith.addf %100, %35 : vector<8x8xf32>
    %cst_32 = arith.constant dense<0xFF800000> : vector<8xf32>
    %102 = vector.multi_reduction <maximumf>, %101, %cst_32 [1] : vector<8x8xf32> to vector<8xf32>
    %103 = vector.shape_cast %102 : vector<8xf32> to vector<8x1xf32>
    %104 = vector.broadcast %103 : vector<8x1xf32> to vector<8x8xf32>
    %105 = arith.subf %101, %104 : vector<8x8xf32>
    %106 = math.exp %105 : vector<8x8xf32>
    %cst_33 = arith.constant dense<0.000000e+00> : vector<8xf32>
    %107 = vector.multi_reduction <add>, %106, %cst_33 [1] : vector<8x8xf32> to vector<8xf32>
    %108 = vector.shape_cast %107 : vector<8xf32> to vector<8x1xf32>
    %109 = tpu.reciprocal %108 {approx = true} : vector<8x1xf32> -> vector<8x1xf32>
    %110 = vector.broadcast %109 : vector<8x1xf32> to vector<8x8xf32>
    %111 = arith.mulf %106, %110 : vector<8x8xf32>
    %112 = arith.truncf %111 : vector<8x8xf32> to vector<8x8xbf16>
    %cst_34 = arith.constant dense<0.000000e+00> : vector<8x8xf32>
    %113 = tpu.matmul %112, %98, %cst_34 {dimension_numbers = #tpu.dot_dimension_numbers<[1], [0], [0], [1], [0, 0, 1, 1], [], []>} : vector<8x8xbf16>, vector<8x8xbf16>, vector<8x8xf32> -> vector<8x8xf32>
    %114 = arith.truncf %113 : vector<8x8xf32> to vector<8x8xbf16>
    %c0_35 = arith.constant 0 : index
    %c24 = arith.constant 24 : index
    %115 = vector.load %arg14[%c0_35, %c24] : memref<8x32xbf16, #tpu.memory_space<vmem>>, vector<8x8xbf16>
    tpu.vector_store %arg14[%c0_35, %c24], %114 {strides = array<i32>} : memref<8x32xbf16, #tpu.memory_space<vmem>>, vector<8x8xbf16>,
    %c0_36 = arith.constant 0 : index
    %c0_37 = arith.constant 0 : index
    %116 = vector.load %arg14[%c0_36, %c0_37] : memref<8x32xbf16, #tpu.memory_space<vmem>>, vector<8x32xbf16>
    %c0_38 = arith.constant 0 : index
    %c0_39 = arith.constant 0 : index
    %117 = vector.load %arg3[%c0_38, %c0_39] : memref<32x32xbf16, #tpu.memory_space<vmem>>, vector<32x32xbf16>
    %cst_40 = arith.constant dense<0.000000e+00> : vector<8x32xf32>
    %118 = tpu.matmul %116, %117, %cst_40 {dimension_numbers = #tpu.dot_dimension_numbers<[1], [0], [0], [1], [0, 0, 1, 1], [], []>} : vector<8x32xbf16>, vector<32x32xbf16>, vector<8x32xf32> -> vector<8x32xf32>
    %119 = arith.addf %1, %118 : vector<8x32xf32>
    %c0_41 = arith.constant 0 : index
    %c0_42 = arith.constant 0 : index
    %120 = vector.load %arg4[%c0_41, %c0_42] : memref<1x32xf32, #tpu.memory_space<vmem>>, vector<1x32xf32>
    %121 = vector.broadcast %120 : vector<1x32xf32> to vector<8x32xf32>
    %122 = arith.addf %119, %121 : vector<8x32xf32>
    %cst_43 = arith.constant dense<0.000000e+00> : vector<8xf32>
    %123 = vector.multi_reduction <add>, %122, %cst_43 [1] : vector<8x32xf32> to vector<8xf32>
    %124 = vector.shape_cast %123 : vector<8xf32> to vector<8x1xf32>
    %cst_44 = arith.constant 3.200000e+01 : f32
    %125 = vector.broadcast %cst_44 : f32 to vector<8x1xf32>
    %126 = arith.divf %124, %125 : vector<8x1xf32>
    %127 = vector.broadcast %126 : vector<8x1xf32> to vector<8x32xf32>
    %128 = arith.subf %122, %127 : vector<8x32xf32>
    %129 = arith.mulf %128, %128 : vector<8x32xf32>
    %cst_45 = arith.constant dense<0.000000e+00> : vector<8xf32>
    %130 = vector.multi_reduction <add>, %129, %cst_45 [1] : vector<8x32xf32> to vector<8xf32>
    %131 = vector.shape_cast %130 : vector<8xf32> to vector<8x1xf32>
    %cst_46 = arith.constant 3.200000e+01 : f32
    %132 = vector.broadcast %cst_46 : f32 to vector<8x1xf32>
    %133 = arith.divf %131, %132 : vector<8x1xf32>
    %134 = vector.broadcast %126 : vector<8x1xf32> to vector<8x32xf32>
    %135 = arith.subf %122, %134 : vector<8x32xf32>
    %cst_47 = arith.constant 9.99999974E-6 : f32
    %136 = vector.broadcast %cst_47 : f32 to vector<8x1xf32>
    %137 = arith.addf %133, %136 : vector<8x1xf32>
    %138 = math.rsqrt %137 : vector<8x1xf32>
    %139 = vector.broadcast %138 : vector<8x1xf32> to vector<8x32xf32>
    %140 = arith.mulf %135, %139 : vector<8x32xf32>
    %c0_48 = arith.constant 0 : index
    %c0_49 = arith.constant 0 : index
    %141 = vector.load %arg7[%c0_48, %c0_49] : memref<1x32xf32, #tpu.memory_space<vmem>>, vector<1x32xf32>
    %142 = vector.broadcast %141 : vector<1x32xf32> to vector<8x32xf32>
    %143 = arith.mulf %140, %142 : vector<8x32xf32>
    %c0_50 = arith.constant 0 : index
    %c0_51 = arith.constant 0 : index
    %144 = vector.load %arg8[%c0_50, %c0_51] : memref<1x32xf32, #tpu.memory_space<vmem>>, vector<1x32xf32>
    %145 = vector.broadcast %144 : vector<1x32xf32> to vector<8x32xf32>
    %146 = arith.addf %143, %145 : vector<8x32xf32>
    %147 = arith.truncf %146 : vector<8x32xf32> to vector<8x32xbf16>
    %c0_52 = arith.constant 0 : index
    %c0_53 = arith.constant 0 : index
    %148 = vector.load %arg9[%c0_52, %c0_53] : memref<32x128xbf16, #tpu.memory_space<vmem>>, vector<32x128xbf16>
    %cst_54 = arith.constant dense<0.000000e+00> : vector<8x128xf32>
    %149 = tpu.matmul %147, %148, %cst_54 {dimension_numbers = #tpu.dot_dimension_numbers<[1], [0], [0], [1], [0, 0, 1, 1], [], []>} : vector<8x32xbf16>, vector<32x128xbf16>, vector<8x128xf32> -> vector<8x128xf32>
    %c0_55 = arith.constant 0 : index
    %c0_56 = arith.constant 0 : index
    %150 = vector.load %arg10[%c0_55, %c0_56] : memref<1x128xf32, #tpu.memory_space<vmem>>, vector<1x128xf32>
    %151 = vector.broadcast %150 : vector<1x128xf32> to vector<8x128xf32>
    %152 = arith.addf %149, %151 : vector<8x128xf32>
    %cst_57 = arith.constant 0.000000e+00 : f32
    %153 = vector.broadcast %cst_57 : f32 to vector<8x128xf32>
    %154 = arith.maximumf %152, %153 : vector<8x128xf32>
    %155 = arith.truncf %154 : vector<8x128xf32> to vector<8x128xbf16>
    %c0_58 = arith.constant 0 : index
    %c0_59 = arith.constant 0 : index
    %156 = vector.load %arg11[%c0_58, %c0_59] : memref<128x32xbf16, #tpu.memory_space<vmem>>, vector<128x32xbf16>
    %cst_60 = arith.constant dense<0.000000e+00> : vector<8x32xf32>
    %157 = tpu.matmul %155, %156, %cst_60 {dimension_numbers = #tpu.dot_dimension_numbers<[1], [0], [0], [1], [0, 0, 1, 1], [], []>} : vector<8x128xbf16>, vector<128x32xbf16>, vector<8x32xf32> -> vector<8x32xf32>
    %c0_61 = arith.constant 0 : index
    %c0_62 = arith.constant 0 : index
    %158 = vector.load %arg12[%c0_61, %c0_62] : memref<1x32xf32, #tpu.memory_space<vmem>>, vector<1x32xf32>
    %159 = vector.broadcast %158 : vector<1x32xf32> to vector<8x32xf32>
    %160 = arith.addf %157, %159 : vector<8x32xf32>
    %161 = arith.addf %122, %160 : vector<8x32xf32>
    %c0_63 = arith.constant 0 : index
    %c0_64 = arith.constant 0 : index
    %c0_65 = arith.constant 0 : index
    %162 = vector.load %arg13[%c0_63, %c0_64, %c0_65] : memref<1x8x32xf32, #tpu.memory_space<vmem>>, vector<1x8x32xf32>
    %163 = vector.shape_cast %162 : vector<1x8x32xf32> to vector<8x32xf32>
    %164 = vector.shape_cast %161 : vector<8x32xf32> to vector<1x8x32xf32>
    tpu.vector_store %arg13[%c0_63, %c0_64, %c0_65], %164 {strides = array<i32>} : memref<1x8x32xf32, #tpu.memory_space<vmem>>, vector<1x8x32xf32>,
    return
  }
  func.func @transform_0(%arg0: i32) -> (i32, i32, i32) {
    %c0_i32 = arith.constant 0 : i32
    %c0_i32_0 = arith.constant 0 : i32
    %c0_i32_1 = arith.constant 0 : i32
    return %arg0, %c0_i32, %c0_i32_0 : i32, i32, i32
  }
  func.func @transform_1(%arg0: i32) -> (i32, i32) {
    %c0_i32 = arith.constant 0 : i32
    %c0_i32_0 = arith.constant 0 : i32
    %c0_i32_1 = arith.constant 0 : i32
    return %c0_i32, %c0_i32_0 : i32, i32
  }
  func.func @transform_2(%arg0: i32) -> (i32, i32) {
    %c0_i32 = arith.constant 0 : i32
    %c0_i32_0 = arith.constant 0 : i32
    %c0_i32_1 = arith.constant 0 : i32
    return %c0_i32, %c0_i32_0 : i32, i32
  }
  func.func @transform_3(%arg0: i32) -> (i32, i32) {
    %c0_i32 = arith.constant 0 : i32
    %c0_i32_0 = arith.constant 0 : i32
    %c0_i32_1 = arith.constant 0 : i32
    return %c0_i32, %c0_i32_0 : i32, i32
  }
  func.func @transform_4(%arg0: i32) -> (i32, i32) {
    %c0_i32 = arith.constant 0 : i32
    %c0_i32_0 = arith.constant 0 : i32
    %c0_i32_1 = arith.constant 0 : i32
    return %c0_i32, %c0_i32_0 : i32, i32
  }
  func.func @transform_5(%arg0: i32) -> (i32, i32) {
    %c0_i32 = arith.constant 0 : i32
    %c0_i32_0 = arith.constant 0 : i32
    %c0_i32_1 = arith.constant 0 : i32
    return %c0_i32, %c0_i32_0 : i32, i32
  }
  func.func @transform_6(%arg0: i32) -> (i32, i32) {
    %c0_i32 = arith.constant 0 : i32
    %c0_i32_0 = arith.constant 0 : i32
    %c0_i32_1 = arith.constant 0 : i32
    return %c0_i32, %c0_i32_0 : i32, i32
  }
  func.func @transform_7(%arg0: i32) -> (i32, i32) {
    %c0_i32 = arith.constant 0 : i32
    %c0_i32_0 = arith.constant 0 : i32
    %c0_i32_1 = arith.constant 0 : i32
    return %c0_i32, %c0_i32_0 : i32, i32
  }
  func.func @transform_8(%arg0: i32) -> (i32, i32) {
    %c0_i32 = arith.constant 0 : i32
    %c0_i32_0 = arith.constant 0 : i32
    %c0_i32_1 = arith.constant 0 : i32
    return %c0_i32, %c0_i32_0 : i32, i32
  }
  func.func @transform_9(%arg0: i32) -> (i32, i32) {
    %c0_i32 = arith.constant 0 : i32
    %c0_i32_0 = arith.constant 0 : i32
    %c0_i32_1 = arith.constant 0 : i32
    return %c0_i32, %c0_i32_0 : i32, i32
  }
  func.func @transform_10(%arg0: i32) -> (i32, i32) {
    %c0_i32 = arith.constant 0 : i32
    %c0_i32_0 = arith.constant 0 : i32
    %c0_i32_1 = arith.constant 0 : i32
    return %c0_i32, %c0_i32_0 : i32, i32
  }
  func.func @transform_11(%arg0: i32) -> (i32, i32) {
    %c0_i32 = arith.constant 0 : i32
    %c0_i32_0 = arith.constant 0 : i32
    %c0_i32_1 = arith.constant 0 : i32
    return %c0_i32, %c0_i32_0 : i32, i32
  }
  func.func @transform_12(%arg0: i32) -> (i32, i32, i32) {
    %c0_i32 = arith.constant 0 : i32
    %c0_i32_0 = arith.constant 0 : i32
    %c0_i32_1 = arith.constant 0 : i32
    return %arg0, %c0_i32, %c0_i32_0 : i32, i32, i32
  }
}

</mosaic_0001>

<llo_original>
// kernel: tpu_custom_call.1
$region0: #{tpu_custom_call.1}
  #allocation0 [shape = 'u32[]', space=smem, size = 0x4, offset = 0x4, fixed_abs, tag = 'smem constant byte address 0x4 - core index']
  #allocation1 [shape = 'u32[72,128]{1,0:T(1,128)}', space=vmem, size = 0x9000, scoped, tag = 'internal scratch']
  #allocation2 [shape = 'bf16[8,32]{1,0:T(8,128)(2,1)}', space=vmem, size = 0x800, scoped, tag = 'scratch operand']
  %s0 = inlined_call_operand.vmem [shape: f32[2,8,32], index: 0, kind: input, shape index: {}]
  %s1 = inlined_call_operand.vmem [shape: bf16[32,96], index: 1, kind: input, shape index: {}]
  %s2 = inlined_call_operand.vmem [shape: bf16[32,32], index: 2, kind: input, shape index: {}]
  %s3 = inlined_call_operand.vmem [shape: f32[1,32], index: 3, kind: input, shape index: {}]
  %s4 = inlined_call_operand.vmem [shape: f32[1,32], index: 4, kind: input, shape index: {}]
  %s5 = inlined_call_operand.vmem [shape: f32[1,32], index: 5, kind: input, shape index: {}]
  %s6 = inlined_call_operand.vmem [shape: f32[1,32], index: 6, kind: input, shape index: {}]
  %s7 = inlined_call_operand.vmem [shape: f32[1,32], index: 7, kind: input, shape index: {}]
  %s8 = inlined_call_operand.vmem [shape: bf16[32,128], index: 8, kind: input, shape index: {}]
  %s9 = inlined_call_operand.vmem [shape: f32[1,128], index: 9, kind: input, shape index: {}]
  %s10 = inlined_call_operand.vmem [shape: bf16[128,32], index: 10, kind: input, shape index: {}]
  %s11 = inlined_call_operand.vmem [shape: f32[1,32], index: 11, kind: input, shape index: {}]
  %s12 = inlined_call_operand.hbm [shape: f32[2,8,32], index: 12, kind: output, shape index: {}]
  %s13 = sld [smem:[#allocation0]]
  $region81: #{tpu_custom_call.1} parent=0
    _
  %s15 = ssub.s32 1, %s13
  %s16 = scalar_select 0, %s15, %s13
  $region1: #{tpu_custom_call.1} parent=0
    #allocation3 [shape = 'u8[8192]{0}', space=vmem, size = 0x2000, scoped, tag = 'output window, operand 0']
    #allocation4 [shape = 's32[2]{0}', space=sflag, size = 0x8, scoped, tag = 'scoped memory for tpu_custom_call.1']
    %17 = vsyncpa [#allocation4], 0
    %s18 = scalar_lea.sflag [#allocation4], 1
    %19 = vsyncpa %s18, 0
    loop: start=0, step=1, limit=4
    $region2: #{tpu_custom_call.1} parent=1 // loop_pre_header
      _
    $region3: #{tpu_custom_call.1} parent=1 // loop_header
      %s21 = sphi 0, %s25
      %p22 = scmp.ge.s32.totalorder %s21, 4
      %s31 = sphi 0, %s33
      %s34 = sphi 0, %s31
      %s35 = sphi 0, %s34
      %s51 = sphi 0, %s35
      %s55 = sphi 0, %s55
      %s57 = sphi 0, %s55
      %s58 = sphi 0, %s57
      %s72 = sphi 0, %s58
      %s76 = sphi 0, %s76
      %s78 = sphi 0, %s76
      %s79 = sphi 0, %s78
      %s93 = sphi 0, %s79
      %s97 = sphi 0, %s97
      %s99 = sphi 0, %s97
      %s100 = sphi 0, %s99
      %s114 = sphi 0, %s100
      %s118 = sphi 0, %s118
      %s120 = sphi 0, %s118
      %s121 = sphi 0, %s120
      %s135 = sphi 0, %s121
      %s139 = sphi 0, %s139
      %s141 = sphi 0, %s139
      %s142 = sphi 0, %s141
      %s156 = sphi 0, %s142
      %s160 = sphi 0, %s160
      %s162 = sphi 0, %s160
      %s163 = sphi 0, %s162
      %s177 = sphi 0, %s163
      %s181 = sphi 0, %s181
      %s183 = sphi 0, %s181
      %s184 = sphi 0, %s183
      %s198 = sphi 0, %s184
      %s202 = sphi 0, %s202
      %s204 = sphi 0, %s202
      %s205 = sphi 0, %s204
      %s219 = sphi 0, %s205
      %s223 = sphi 0, %s223
      %s225 = sphi 0, %s223
      %s226 = sphi 0, %s225
      %s240 = sphi 0, %s226
      %s244 = sphi 0, %s244
      %s246 = sphi 0, %s244
      %s247 = sphi 0, %s246
      %s261 = sphi 0, %s247
      %s265 = sphi 0, %s265
      %s267 = sphi 0, %s265
      %s268 = sphi 0, %s267
      %s282 = sphi 0, %s268
      %s288 = sphi 0, %s290
      %s291 = sphi 0, %s288
      %s292 = sphi 0, %s291
      %s308 = sphi 0, %s292
    $region4: #{tpu_custom_call.1} parent=1 // loop_header_branch
      %24 = sbr.rel (%p22) target = $region8
    $region5: #{tpu_custom_call.1} parent=1 // loop_body
      %s26 = ssub.s32 %s21, 1
      %s27 = ssub.s32 %s21, 2
      %s28 = sadd.s32 %s21, 1
      %s29 = ssub.s32 %s21, %s28
      %p30 = scmp.eq.s32.totalorder %s29, 0
      %s32 = sadd.s32 %s31, 1
      %s33 = scalar_select %p30, %s31, %s32
      %p36 = pneg %p30
      %p37 = scmp.eq.s32.totalorder %s21, 1
      %p38 = por %p36, %p37
      %p39 = scmp.ne.s32.totalorder %s31, %s34
      %p40 = scmp.eq.s32.totalorder %s21, 0
      %p41 = por %p39, %p40
      %p42 = scmp.ne.s32.totalorder %s31, %s34
      %p43 = scmp.eq.s32.totalorder %s26, 1
      %p44 = por %p42, %p43
      %p45 = scmp.ne.s32.totalorder %s34, %s35
      %p46 = scmp.eq.s32.totalorder %s26, 0
      %p47 = por %p45, %p46
      %p48 = scmp.ne.s32.totalorder %s34, %s35
      %p49 = scmp.eq.s32.totalorder %s27, 1
      %p50 = por %p48, %p49
      %p52 = scmp.ne.s32.totalorder %s35, %s51
      %p53 = scmp.eq.s32.totalorder %s27, 0
      %p54 = por %p52, %p53
      %s56 = sadd.s32 %s55, 1
      %p59 = scmp.eq.s32.totalorder %s21, 1
      %p60 = scmp.ne.s32.totalorder %s55, %s57
      %p61 = scmp.eq.s32.totalorder %s21, 0
      %p62 = por %p60, %p61
      %p63 = scmp.ne.s32.totalorder %s55, %s57
      %p64 = scmp.eq.s32.totalorder %s26, 1
      %p65 = por %p63, %p64
      %p66 = scmp.ne.s32.totalorder %s57, %s58
      %p67 = scmp.eq.s32.totalorder %s26, 0
      %p68 = por %p66, %p67
      %p69 = scmp.ne.s32.totalorder %s57, %s58
      %p70 = scmp.eq.s32.totalorder %s27, 1
      %p71 = por %p69, %p70
      %p73 = scmp.ne.s32.totalorder %s58, %s72
      %p74 = scmp.eq.s32.totalorder %s27, 0
      %p75 = por %p73, %p74
      %s77 = sadd.s32 %s76, 1
      %p80 = scmp.eq.s32.totalorder %s21, 1
      %p81 = scmp.ne.s32.totalorder %s76, %s78
      %p82 = scmp.eq.s32.totalorder %s21, 0
      %p83 = por %p81, %p82
      %p84 = scmp.ne.s32.totalorder %s76, %s78
      %p85 = scmp.eq.s32.totalorder %s26, 1
      %p86 = por %p84, %p85
      %p87 = scmp.ne.s32.totalorder %s78, %s79
      %p88 = scmp.eq.s32.totalorder %s26, 0
      %p89 = por %p87, %p88
      %p90 = scmp.ne.s32.totalorder %s78, %s79
      %p91 = scmp.eq.s32.totalorder %s27, 1
      %p92 = por %p90, %p91
      %p94 = scmp.ne.s32.totalorder %s79, %s93
      %p95 = scmp.eq.s32.totalorder %s27, 0
      %p96 = por %p94, %p95
      %s98 = sadd.s32 %s97, 1
      %p101 = scmp.eq.s32.totalorder %s21, 1
      %p102 = scmp.ne.s32.totalorder %s97, %s99
      %p103 = scmp.eq.s32.totalorder %s21, 0
      %p104 = por %p102, %p103
      %p105 = scmp.ne.s32.totalorder %s97, %s99
      %p106 = scmp.eq.s32.totalorder %s26, 1
      %p107 = por %p105, %p106
      %p108 = scmp.ne.s32.totalorder %s99, %s100
      %p109 = scmp.eq.s32.totalorder %s26, 0
      %p110 = por %p108, %p109
      %p111 = scmp.ne.s32.totalorder %s99, %s100
      %p112 = scmp.eq.s32.totalorder %s27, 1
      %p113 = por %p111, %p112
      %p115 = scmp.ne.s32.totalorder %s100, %s114
      %p116 = scmp.eq.s32.totalorder %s27, 0
      %p117 = por %p115, %p116
      %s119 = sadd.s32 %s118, 1
      %p122 = scmp.eq.s32.totalorder %s21, 1
      %p123 = scmp.ne.s32.totalorder %s118, %s120
      %p124 = scmp.eq.s32.totalorder %s21, 0
      %p125 = por %p123, %p124
      %p126 = scmp.ne.s32.totalorder %s118, %s120
      %p127 = scmp.eq.s32.totalorder %s26, 1
      %p128 = por %p126, %p127
      %p129 = scmp.ne.s32.totalorder %s120, %s121
      %p130 = scmp.eq.s32.totalorder %s26, 0
      %p131 = por %p129, %p130
      %p132 = scmp.ne.s32.totalorder %s120, %s121
      %p133 = scmp.eq.s32.totalorder %s27, 1
      %p134 = por %p132, %p133
      %p136 = scmp.ne.s32.totalorder %s121, %s135
      %p137 = scmp.eq.s32.totalorder %s27, 0
      %p138 = por %p136, %p137
      %s140 = sadd.s32 %s139, 1
      %p143 = scmp.eq.s32.totalorder %s21, 1
      %p144 = scmp.ne.s32.totalorder %s139, %s141
      %p145 = scmp.eq.s32.totalorder %s21, 0
      %p146 = por %p144, %p145
      %p147 = scmp.ne.s32.totalorder %s139, %s141
      %p148 = scmp.eq.s32.totalorder %s26, 1
      %p149 = por %p147, %p148
      %p150 = scmp.ne.s32.totalorder %s141, %s142
      %p151 = scmp.eq.s32.totalorder %s26, 0
      %p152 = por %p150, %p151
      %p153 = scmp.ne.s32.totalorder %s141, %s142
      %p154 = scmp.eq.s32.totalorder %s27, 1
      %p155 = por %p153, %p154
      %p157 = scmp.ne.s32.totalorder %s142, %s156
      %p158 = scmp.eq.s32.totalorder %s27, 0
      %p159 = por %p157, %p158
      %s161 = sadd.s32 %s160, 1
      %p164 = scmp.eq.s32.totalorder %s21, 1
      %p165 = scmp.ne.s32.totalorder %s160, %s162
      %p166 = scmp.eq.s32.totalorder %s21, 0
      %p167 = por %p165, %p166
      %p168 = scmp.ne.s32.totalorder %s160, %s162
      %p169 = scmp.eq.s32.totalorder %s26, 1
      %p170 = por %p168, %p169
      %p171 = scmp.ne.s32.totalorder %s162, %s163
      %p172 = scmp.eq.s32.totalorder %s26, 0
      %p173 = por %p171, %p172
      %p174 = scmp.ne.s32.totalorder %s162, %s163
      %p175 = scmp.eq.s32.totalorder %s27, 1
      %p176 = por %p174, %p175
      %p178 = scmp.ne.s32.totalorder %s163, %s177
      %p179 = scmp.eq.s32.totalorder %s27, 0
      %p180 = por %p178, %p179
      %s182 = sadd.s32 %s181, 1
      %p185 = scmp.eq.s32.totalorder %s21, 1
      %p186 = scmp.ne.s32.totalorder %s181, %s183
      %p187 = scmp.eq.s32.totalorder %s21, 0
      %p188 = por %p186, %p187
      %p189 = scmp.ne.s32.totalorder %s181, %s183
      %p190 = scmp.eq.s32.totalorder %s26, 1
      %p191 = por %p189, %p190
      %p192 = scmp.ne.s32.totalorder %s183, %s184
      %p193 = scmp.eq.s32.totalorder %s26, 0
      %p194 = por %p192, %p193
      %p195 = scmp.ne.s32.totalorder %s183, %s184
      %p196 = scmp.eq.s32.totalorder %s27, 1
      %p197 = por %p195, %p196
      %p199 = scmp.ne.s32.totalorder %s184, %s198
      %p200 = scmp.eq.s32.totalorder %s27, 0
      %p201 = por %p199, %p200
      %s203 = sadd.s32 %s202, 1
      %p206 = scmp.eq.s32.totalorder %s21, 1
      %p207 = scmp.ne.s32.totalorder %s202, %s204
      %p208 = scmp.eq.s32.totalorder %s21, 0
      %p209 = por %p207, %p208
      %p210 = scmp.ne.s32.totalorder %s202, %s204
      %p211 = scmp.eq.s32.totalorder %s26, 1
      %p212 = por %p210, %p211
      %p213 = scmp.ne.s32.totalorder %s204, %s205
      %p214 = scmp.eq.s32.totalorder %s26, 0
      %p215 = por %p213, %p214
      %p216 = scmp.ne.s32.totalorder %s204, %s205
      %p217 = scmp.eq.s32.totalorder %s27, 1
      %p218 = por %p216, %p217
      %p220 = scmp.ne.s32.totalorder %s205, %s219
      %p221 = scmp.eq.s32.totalorder %s27, 0
      %p222 = por %p220, %p221
      %s224 = sadd.s32 %s223, 1
      %p227 = scmp.eq.s32.totalorder %s21, 1
      %p228 = scmp.ne.s32.totalorder %s223, %s225
      %p229 = scmp.eq.s32.totalorder %s21, 0
      %p230 = por %p228, %p229
      %p231 = scmp.ne.s32.totalorder %s223, %s225
      %p232 = scmp.eq.s32.totalorder %s26, 1
      %p233 = por %p231, %p232
      %p234 = scmp.ne.s32.totalorder %s225, %s226
      %p235 = scmp.eq.s32.totalorder %s26, 0
      %p236 = por %p234, %p235
      %p237 = scmp.ne.s32.totalorder %s225, %s226
      %p238 = scmp.eq.s32.totalorder %s27, 1
      %p239 = por %p237, %p238
      %p241 = scmp.ne.s32.totalorder %s226, %s240
      %p242 = scmp.eq.s32.totalorder %s27, 0
      %p243 = por %p241, %p242
      %s245 = sadd.s32 %s244, 1
      %p248 = scmp.eq.s32.totalorder %s21, 1
      %p249 = scmp.ne.s32.totalorder %s244, %s246
      %p250 = scmp.eq.s32.totalorder %s21, 0
      %p251 = por %p249, %p250
      %p252 = scmp.ne.s32.totalorder %s244, %s246
      %p253 = scmp.eq.s32.totalorder %s26, 1
      %p254 = por %p252, %p253
      %p255 = scmp.ne.s32.totalorder %s246, %s247
      %p256 = scmp.eq.s32.totalorder %s26, 0
      %p257 = por %p255, %p256
      %p258 = scmp.ne.s32.totalorder %s246, %s247
      %p259 = scmp.eq.s32.totalorder %s27, 1
      %p260 = por %p258, %p259
      %p262 = scmp.ne.s32.totalorder %s247, %s261
      %p263 = scmp.eq.s32.totalorder %s27, 0
      %p264 = por %p262, %p263
      %s266 = sadd.s32 %s265, 1
      %p269 = scmp.eq.s32.totalorder %s21, 1
      %p270 = scmp.ne.s32.totalorder %s265, %s267
      %p271 = scmp.eq.s32.totalorder %s21, 0
      %p272 = por %p270, %p271
      %p273 = scmp.ne.s32.totalorder %s265, %s267
      %p274 = scmp.eq.s32.totalorder %s26, 1
      %p275 = por %p273, %p274
      %p276 = scmp.ne.s32.totalorder %s267, %s268
      %p277 = scmp.eq.s32.totalorder %s26, 0
      %p278 = por %p276, %p277
      %p279 = scmp.ne.s32.totalorder %s267, %s268
      %p280 = scmp.eq.s32.totalorder %s27, 1
      %p281 = por %p279, %p280
      %p283 = scmp.ne.s32.totalorder %s268, %s282
      %p284 = scmp.eq.s32.totalorder %s27, 0
      %p285 = por %p283, %p284
      %s286 = ssub.s32 %s21, %s28
      %p287 = scmp.eq.s32.totalorder %s286, 0
      %s289 = sadd.s32 %s288, 1
      %s290 = scalar_select %p287, %s288, %s289
      %p293 = pneg %p287
      %p294 = scmp.eq.s32.totalorder %s21, 1
      %p295 = por %p293, %p294
      %p296 = scmp.ne.s32.totalorder %s288, %s291
      %p297 = scmp.eq.s32.totalorder %s21, 0
      %p298 = por %p296, %p297
      %p299 = scmp.ne.s32.totalorder %s288, %s291
      %p300 = scmp.eq.s32.totalorder %s26, 1
      %p301 = por %p299, %p300
      %p302 = scmp.ne.s32.totalorder %s291, %s292
      %p303 = scmp.eq.s32.totalorder %s26, 0
      %p304 = por %p302, %p303
      %p305 = scmp.ne.s32.totalorder %s291, %s292
      %p306 = scmp.eq.s32.totalorder %s27, 1
      %p307 = por %p305, %p306
      %p309 = scmp.ne.s32.totalorder %s292, %s308
      %p310 = scmp.eq.s32.totalorder %s27, 0
      %p311 = por %p309, %p310
      %p312 = scmp.le.s32.totalorder 1, %s21
      %p313 = scmp.lt.s32.totalorder %s21, 3
      %p314 = pnand %p312, %p313
      %p315 = pneg %p314
      // Predicated region
      $region9: #{tpu_custom_call.1} parent=5 // pred_check
        _
      $region10: #{tpu_custom_call.1} parent=5 // pred_check_branch
        %317 = sbr.rel (%p314) target = $region12
      $region11: #{tpu_custom_call.1} parent=5 // pred_region
        %s318 = ssub.s32 %s21, 1
        // Predicated region
        $region13: #{tpu_custom_call.1} parent=11 // pred_check
          %p319 = pneg %p68
        $region14: #{tpu_custom_call.1} parent=11 // pred_check_branch
          %321 = sbr.rel (%p319) target = $region16
        $region15: #{tpu_custom_call.1} parent=11 // pred_region
          _
        $region16: #{tpu_custom_call.1} parent=11 // pred_fallthru
          _
        // Predicated region
        $region17: #{tpu_custom_call.1} parent=11 // pred_check
          %p322 = pneg %p89
        $region18: #{tpu_custom_call.1} parent=11 // pred_check_branch
          %324 = sbr.rel (%p322) target = $region20
        $region19: #{tpu_custom_call.1} parent=11 // pred_region
          _
        $region20: #{tpu_custom_call.1} parent=11 // pred_fallthru
          _
        // Predicated region
        $region21: #{tpu_custom_call.1} parent=11 // pred_check
          %p325 = pneg %p110
        $region22: #{tpu_custom_call.1} parent=11 // pred_check_branch
          %327 = sbr.rel (%p325) target = $region24
        $region23: #{tpu_custom_call.1} parent=11 // pred_region
          _
        $region24: #{tpu_custom_call.1} parent=11 // pred_fallthru
          _
        // Predicated region
        $region25: #{tpu_custom_call.1} parent=11 // pred_check
          %p328 = pneg %p131
        $region26: #{tpu_custom_call.1} parent=11 // pred_check_branch
          %330 = sbr.rel (%p328) target = $region28
        $region27: #{tpu_custom_call.1} parent=11 // pred_region
          _
        $region28: #{tpu_custom_call.1} parent=11 // pred_fallthru
          _
        // Predicated region
        $region29: #{tpu_custom_call.1} parent=11 // pred_check
          %p331 = pneg %p152
        $region30: #{tpu_custom_call.1} parent=11 // pred_check_branch
          %333 = sbr.rel (%p331) target = $region32
        $region31: #{tpu_custom_call.1} parent=11 // pred_region
          _
        $region32: #{tpu_custom_call.1} parent=11 // pred_fallthru
          _
        // Predicated region
        $region33: #{tpu_custom_call.1} parent=11 // pred_check
          %p334 = pneg %p173
        $region34: #{tpu_custom_call.1} parent=11 // pred_check_branch
          %336 = sbr.rel (%p334) target = $region36
        $region35: #{tpu_custom_call.1} parent=11 // pred_region
          _
        $region36: #{tpu_custom_call.1} parent=11 // pred_fallthru
          _
        // Predicated region
        $region37: #{tpu_custom_call.1} parent=11 // pred_check
          %p337 = pneg %p194
        $region38: #{tpu_custom_call.1} parent=11 // pred_check_branch
          %339 = sbr.rel (%p337) target = $region40
        $region39: #{tpu_custom_call.1} parent=11 // pred_region
          _
        $region40: #{tpu_custom_call.1} parent=11 // pred_fallthru
          _
        // Predicated region
        $region41: #{tpu_custom_call.1} parent=11 // pred_check
          %p340 = pneg %p215
        $region42: #{tpu_custom_call.1} parent=11 // pred_check_branch
          %342 = sbr.rel (%p340) target = $region44
        $region43: #{tpu_custom_call.1} parent=11 // pred_region
          _
        $region44: #{tpu_custom_call.1} parent=11 // pred_fallthru
          _
        // Predicated region
        $region45: #{tpu_custom_call.1} parent=11 // pred_check
          %p343 = pneg %p236
        $region46: #{tpu_custom_call.1} parent=11 // pred_check_branch
          %345 = sbr.rel (%p343) target = $region48
        $region47: #{tpu_custom_call.1} parent=11 // pred_region
          _
        $region48: #{tpu_custom_call.1} parent=11 // pred_fallthru
          _
        // Predicated region
        $region49: #{tpu_custom_call.1} parent=11 // pred_check
          %p346 = pneg %p257
        $region50: #{tpu_custom_call.1} parent=11 // pred_check_branch
          %348 = sbr.rel (%p346) target = $region52
        $region51: #{tpu_custom_call.1} parent=11 // pred_region
          _
        $region52: #{tpu_custom_call.1} parent=11 // pred_fallthru
          _
        // Predicated region
        $region53: #{tpu_custom_call.1} parent=11 // pred_check
          %p349 = pneg %p278
        $region54: #{tpu_custom_call.1} parent=11 // pred_check_branch
          %351 = sbr.rel (%p349) target = $region56
        $region55: #{tpu_custom_call.1} parent=11 // pred_region
          _
        $region56: #{tpu_custom_call.1} parent=11 // pred_fallthru
          _
      $region12: #{tpu_custom_call.1} parent=5 // pred_fallthru
        _
      %p352 = scmp.lt.s32.totalorder %s21, 2
      // Predicated region
      $region57: #{tpu_custom_call.1} parent=5 // pred_check
        %p353 = pneg %p352
      $region58: #{tpu_custom_call.1} parent=5 // pred_check_branch
        %355 = sbr.rel (%p353) target = $region60
      $region59: #{tpu_custom_call.1} parent=5 // pred_region
        // Predicated region
        $region61: #{tpu_custom_call.1} parent=59 // pred_check
          %p356 = pneg %p41
        $region62: #{tpu_custom_call.1} parent=59 // pred_check_branch
          %358 = sbr.rel (%p356) target = $region64
        $region63: #{tpu_custom_call.1} parent=59 // pred_region
          %p359 = scmp.lt.s32.totalorder %s21, 1
          %s360 = scalar_select %p359, %s21, 1
          %s361 = smul.addr %s360, 8
          %s362 = scalar_lea.vmem %s0, %s361
        $region64: #{tpu_custom_call.1} parent=59 // pred_fallthru
          _
      $region60: #{tpu_custom_call.1} parent=5 // pred_fallthru
        _
      %p363 = scmp.le.s32.totalorder 1, %s21
      %p364 = scmp.lt.s32.totalorder %s21, 3
      %p365 = pnand %p363, %p364
      %p366 = pneg %p365
      // Predicated region
      $region65: #{tpu_custom_call.1} parent=5 // pred_check
        _
      $region66: #{tpu_custom_call.1} parent=5 // pred_check_branch
        %368 = sbr.rel (%p365) target = $region68
      $region67: #{tpu_custom_call.1} parent=5 // pred_region
        %s369 = ssub.s32 %s21, 1
        %p370 = scmp.lt.s32.totalorder %s26, 1
        %s371 = scalar_select %p370, %s26, 1
        %s372 = smul.addr %s371, 8
        %s373 = scalar_lea.vmem %s0, %s372
        %p374 = pneg %p47
        %p375 = pneg %p44
        %p376 = pneg %p68
        %p377 = pneg %p65
        %p378 = pneg %p89
        %p379 = pneg %p86
        %p380 = pneg %p110
        %p381 = pneg %p107
        %p382 = pneg %p131
        %p383 = pneg %p128
        %p384 = pneg %p152
        %p385 = pneg %p149
        %p386 = pneg %p173
        %p387 = pneg %p170
        %p388 = pneg %p194
        %p389 = pneg %p191
        %p390 = pneg %p215
        %p391 = pneg %p212
        %p392 = pneg %p236
        %p393 = pneg %p233
        %p394 = pneg %p257
        %p395 = pneg %p254
        %p396 = pneg %p278
        %p397 = pneg %p275
        %p398 = pneg %p304
        %p399 = pneg %p301
        %s400 = sand.u32 %s291, 1
        %s401 = scalar_lea.sflag [#allocation4], %s400
        %s402 = sand.u32 %s291, 1
        %s403 = smul.addr %s402, 8
        %s404 = scalar_lea.vmem [#allocation3], %s403
        %p405 = scmp.lt.s32.totalorder %s26, 1
        %s406 = scalar_select %p405, %s26, 1
        %s407 = smul.addr %s406, 8
        %s408 = scalar_lea.vmem %s0, %s407
        %v410 = vld [vmem:[%s408] sm:$0xff]
        %vm411 = vcmask 261120
        %v412 = vsel %vm411, %v410, 0.0
        %413 = vadd.xlane.f32.xlu0 %v412
        %v414 = vpop.xlane.xlu0 %413
        %v415 = vrcp.pop 32.0
        %v416 = vmul.f32 32.0, %v415
        %v417 = vsub.f32 1.0, %v416
        %v418 = vmul.f32 %v415, %v417
        %v419 = vadd.f32 %v415, %v418
        %vm420 = vweird.f32 %v415
        %v421 = vsel %vm420, %v415, %v419
        %v422 = vmul.f32 %v414, %v421
        %v423 = vsub.f32 %v410, %v422
        %v424 = vmul.f32 %v423, %v423
        %v425 = vsel %vm411, %v424, 0.0
        %426 = vadd.xlane.f32.xlu0 %v425
        %v427 = vpop.xlane.xlu0 %426
        %v428 = vmul.f32 %v427, %v421
        %v429 = vadd.f32 %v428, 1e-05
        %v430 = vrsqrt.pop %v429
        %v431 = vmul.f32 %v430, %v429
        %v432 = vmul.f32 %v431, %v430
        %v433 = vmul.f32 0.5, %v432
        %v434 = vsub.f32 1.5, %v433
        %v435 = vmul.f32 %v430, %v434
        %vm436 = vweird.f32 %v429
        %vm437 = vweird.f32 %v430
        %vm438 = vmor %vm436, %vm437
        %v439 = vsel %vm438, %v430, %v435
        %v440 = vmul.f32 %v423, %v439
        %v441 = vld [vmem:[%s4] sm:$0x1]
        %v443 = vperm.slane %v441, 0
        %v445 = vmul.f32 %v440, %v443
        %v446 = vld [vmem:[%s5] sm:$0x1]
        %v448 = vperm.slane %v446, 0
        %v450 = vadd.f32 %v445, %v448
        %v451 = vpack.c.bf16 %v450, %v450
        %v452 = vld [vmem:[%s1] sm:$0xf]
        %v453 = vld [vmem:[%s1 + $0x4] sm:$0xf]
        %v454 = vld [vmem:[%s1 + $0x8] sm:$0xf]
        %v455 = vld [vmem:[%s1 + $0xc] sm:$0xf]
        %v460 = vunpack.c.l.b16 %v452
        %v461 = vunpack.c.l.b16 %v453
        %v462 = vunpack.c.l.b16 %v454
        %v463 = vunpack.c.l.b16 %v455
        %v464 = vpack.c.b16 %v461, %v460
        %v465 = vpack.c.b16 %v463, %v462
        %v469 = vsel %vm411, %v451, 0
        %471 = vmatpush.bf16.msra.mxu0 0
        %472 = vmatpush.bf16.msra.mxu0 0
        %473 = vmatpush.bf16.msra.mxu0 0
        %474 = vmatpush.bf16.msra.mxu0 0
        %475 = vmatpush.bf16.msra.mxu0 0
        %476 = vmatpush.bf16.msra.mxu0 0
        %477 = vmatpush.bf16.msra.mxu0 %v465
        %478 = vmatpush.bf16.msra.mxu0 %v464
        %479 = vmatmul.bf16.gmra.mxu0 %v469
        %v480 = vpop.f32.mrf.mxu0
        %v481 = vadd.f32 0.0, %v480
        %v482 = vpop.f32.mrf.mxu0
        %483 = vdwg.mxu0
        %v484 = vpack.c.bf16 %v481, %v481
        %v485 = vlaneseq
        %v486 = vshrl.u32 %v485, 7
        %v487 = vlaneseq
        %v488 = vand.u32 %v487, 127
        %vm489 = vcmp.le.s32.totalorder %v488, %v486
        %v490 = vsel %vm489, 0.0, -1e+30
        %v492 = vunpack.c.l.b16 %v484
        %v493 = vpack.c.b16 %v492, %v492
        %494 = vrot.lane.b32.xlu0 %v493, 96
        %v495 = vpop.permute.xlu0 %494
        %vm496 = vcmask 64512
        %v498 = vsel %vm496, %v484, 0
        %v501 = vsel %vm496, %v495, 0
        %503 = vmatpush.bf16.xpose.msra.mxu0 0
        %504 = vmatpush.bf16.xpose.msra.mxu0 0
        %505 = vmatpush.bf16.xpose.msra.mxu0 0
        %506 = vmatpush.bf16.xpose.msra.mxu0 0
        %507 = vmatpush.bf16.xpose.msra.mxu0 0
        %508 = vmatpush.bf16.xpose.msra.mxu0 0
        %509 = vmatpush.bf16.xpose.msra.mxu0 0
        %510 = vmatpush.bf16.xpose.msra.mxu0 %v501
        %511 = vmatmul.bf16.gmra.mxu0 %v498
        %v512 = vpop.f32.mrf.mxu0
        %v513 = vadd.f32 %v490, %v512
        %v514 = vpop.f32.mrf.mxu0
        %515 = vdwg.mxu0
        %v516 = vsel %vm496, %v513, -inf
        %517 = vmax.xlane.f32.xlu0 %v516
        %v518 = vpop.xlane.xlu0 %517
        %v519 = vsub.f32 %v513, %v518
        %v520 = vmul.f32 %v519, 1.442695
        %v521 = vpow.pop %v520
        %v522 = vsel %vm496, %v521, 0.0
        %523 = vadd.xlane.f32.xlu0 %v522
        %v524 = vpop.xlane.xlu0 %523
        %v525 = vrcp.pop %v524
        %v526 = vmul.f32 %v521, %v525
        %v527 = vpack.c.bf16 %v526, %v526
        %528 = vrot.lane.b32.xlu0 %v493, 64
        %v529 = vpop.permute.xlu0 %528
        %v531 = vsel %vm496, %v527, 0
        %vm533 = vcmask 1043456
        %v535 = vsel %vm533, %v529, 0
        %537 = vmatpush.bf16.msra.mxu0 0
        %538 = vmatpush.bf16.msra.mxu0 0
        %539 = vmatpush.bf16.msra.mxu0 0
        %540 = vmatpush.bf16.msra.mxu0 0
        %541 = vmatpush.bf16.msra.mxu0 0
        %542 = vmatpush.bf16.msra.mxu0 0
        %543 = vmatpush.bf16.msra.mxu0 0
        %544 = vmatpush.bf16.msra.mxu0 %v535
        %545 = vmatmul.bf16.gmra.mxu0 %v531
        %v546 = vpop.f32.mrf.mxu0
        %v547 = vadd.f32 0.0, %v546
        %v548 = vpop.f32.mrf.mxu0
        %549 = vdwg.mxu0
        %v550 = vpack.c.bf16 %v547, %v547
        %vm551 = vcmask 60416
        %552 = vst.msk [vmem:[#allocation2] sm:$0xf] %vm551, %v550
        %553 = vrot.lane.b32.xlu0 %v493, 120
        %v554 = vpop.permute.xlu0 %553
        %555 = vrot.lane.b32.xlu0 %v493, 88
        %v556 = vpop.permute.xlu0 %555
        %v558 = vsel %vm496, %v554, 0
        %v561 = vsel %vm496, %v556, 0
        %563 = vmatpush.bf16.xpose.msra.mxu0 0
        %564 = vmatpush.bf16.xpose.msra.mxu0 0
        %565 = vmatpush.bf16.xpose.msra.mxu0 0
        %566 = vmatpush.bf16.xpose.msra.mxu0 0
        %567 = vmatpush.bf16.xpose.msra.mxu0 0
        %568 = vmatpush.bf16.xpose.msra.mxu0 0
        %569 = vmatpush.bf16.xpose.msra.mxu0 0
        %570 = vmatpush.bf16.xpose.msra.mxu0 %v561
        %571 = vmatmul.bf16.gmra.mxu0 %v558
        %v572 = vpop.f32.mrf.mxu0
        %v573 = vadd.f32 %v490, %v572
        %v574 = vpop.f32.mrf.mxu0
        %575 = vdwg.mxu0
        %v576 = vsel %vm496, %v573, -inf
        %577 = vmax.xlane.f32.xlu0 %v576
        %v578 = vpop.xlane.xlu0 %577
        %v579 = vsub.f32 %v573, %v578
        %v580 = vmul.f32 %v579, 1.442695
        %v581 = vpow.pop %v580
        %v582 = vsel %vm496, %v581, 0.0
        %583 = vadd.xlane.f32.xlu0 %v582
        %v584 = vpop.xlane.xlu0 %583
        %v585 = vrcp.pop %v584
        %v586 = vmul.f32 %v581, %v585
        %v587 = vpack.c.bf16 %v586, %v586
        %588 = vrot.lane.b32.xlu0 %v493, 56
        %v589 = vpop.permute.xlu0 %588
        %v591 = vsel %vm496, %v587, 0
        %v594 = vsel %vm533, %v589, 0
        %596 = vmatpush.bf16.msra.mxu0 0
        %597 = vmatpush.bf16.msra.mxu0 0
        %598 = vmatpush.bf16.msra.mxu0 0
        %599 = vmatpush.bf16.msra.mxu0 0
        %600 = vmatpush.bf16.msra.mxu0 0
        %601 = vmatpush.bf16.msra.mxu0 0
        %602 = vmatpush.bf16.msra.mxu0 0
        %603 = vmatpush.bf16.msra.mxu0 %v594
        %604 = vmatmul.bf16.gmra.mxu0 %v591
        %v605 = vpop.f32.mrf.mxu0
        %v606 = vadd.f32 0.0, %v605
        %v607 = vpop.f32.mrf.mxu0
        %608 = vdwg.mxu0
        %v609 = vpack.c.bf16 %v606, %v606
        %611 = vrot.lane.b32.xlu0 %v609, 8
        %v612 = vpop.permute.xlu0 %611
        %vm614 = vcmask 126016
        %615 = vst.msk [vmem:[#allocation2] sm:$0xf] %vm614, %v612
        %616 = vrot.lane.b32.xlu0 %v493, 112
        %v617 = vpop.permute.xlu0 %616
        %618 = vrot.lane.b32.xlu0 %v493, 80
        %v619 = vpop.permute.xlu0 %618
        %v621 = vsel %vm496, %v617, 0
        %v624 = vsel %vm496, %v619, 0
        %626 = vmatpush.bf16.xpose.msra.mxu0 0
        %627 = vmatpush.bf16.xpose.msra.mxu0 0
        %628 = vmatpush.bf16.xpose.msra.mxu0 0
        %629 = vmatpush.bf16.xpose.msra.mxu0 0
        %630 = vmatpush.bf16.xpose.msra.mxu0 0
        %631 = vmatpush.bf16.xpose.msra.mxu0 0
        %632 = vmatpush.bf16.xpose.msra.mxu0 0
        %633 = vmatpush.bf16.xpose.msra.mxu0 %v624
        %634 = vmatmul.bf16.gmra.mxu0 %v621
        %v635 = vpop.f32.mrf.mxu0
        %v636 = vadd.f32 %v490, %v635
        %v637 = vpop.f32.mrf.mxu0
        %638 = vdwg.mxu0
        %v639 = vsel %vm496, %v636, -inf
        %640 = vmax.xlane.f32.xlu0 %v639
        %v641 = vpop.xlane.xlu0 %640
        %v642 = vsub.f32 %v636, %v641
        %v643 = vmul.f32 %v642, 1.442695
        %v644 = vpow.pop %v643
        %v645 = vsel %vm496, %v644, 0.0
        %646 = vadd.xlane.f32.xlu0 %v645
        %v647 = vpop.xlane.xlu0 %646
        %v648 = vrcp.pop %v647
        %v649 = vmul.f32 %v644, %v648
        %v650 = vpack.c.bf16 %v649, %v649
        %651 = vrot.lane.b32.xlu0 %v493, 48
        %v652 = vpop.permute.xlu0 %651
        %v654 = vsel %vm496, %v650, 0
        %v657 = vsel %vm533, %v652, 0
        %659 = vmatpush.bf16.msra.mxu0 0
        %660 = vmatpush.bf16.msra.mxu0 0
        %661 = vmatpush.bf16.msra.mxu0 0
        %662 = vmatpush.bf16.msra.mxu0 0
        %663 = vmatpush.bf16.msra.mxu0 0
        %664 = vmatpush.bf16.msra.mxu0 0
        %665 = vmatpush.bf16.msra.mxu0 0
        %666 = vmatpush.bf16.msra.mxu0 %v657
        %667 = vmatmul.bf16.gmra.mxu0 %v654
        %v668 = vpop.f32.mrf.mxu0
        %v669 = vadd.f32 0.0, %v668
        %v670 = vpop.f32.mrf.mxu0
        %671 = vdwg.mxu0
        %v672 = vpack.c.bf16 %v669, %v669
        %674 = vrot.lane.b32.xlu0 %v672, 16
        %v675 = vpop.permute.xlu0 %674
        %vm677 = vcmask 191616
        %678 = vst.msk [vmem:[#allocation2] sm:$0xf] %vm677, %v675
        %679 = vrot.lane.b32.xlu0 %v493, 104
        %v680 = vpop.permute.xlu0 %679
        %681 = vrot.lane.b32.xlu0 %v493, 72
        %v682 = vpop.permute.xlu0 %681
        %v684 = vsel %vm496, %v680, 0
        %v687 = vsel %vm496, %v682, 0
        %689 = vmatpush.bf16.xpose.msra.mxu0 0
        %690 = vmatpush.bf16.xpose.msra.mxu0 0
        %691 = vmatpush.bf16.xpose.msra.mxu0 0
        %692 = vmatpush.bf16.xpose.msra.mxu0 0
        %693 = vmatpush.bf16.xpose.msra.mxu0 0
        %694 = vmatpush.bf16.xpose.msra.mxu0 0
        %695 = vmatpush.bf16.xpose.msra.mxu0 0
        %696 = vmatpush.bf16.xpose.msra.mxu0 %v687
        %697 = vmatmul.bf16.gmra.mxu0 %v684
        %v698 = vpop.f32.mrf.mxu0
        %v699 = vadd.f32 %v490, %v698
        %v700 = vpop.f32.mrf.mxu0
        %701 = vdwg.mxu0
        %v702 = vsel %vm496, %v699, -inf
        %703 = vmax.xlane.f32.xlu0 %v702
        %v704 = vpop.xlane.xlu0 %703
        %v705 = vsub.f32 %v699, %v704
        %v706 = vmul.f32 %v705, 1.442695
        %v707 = vpow.pop %v706
        %v708 = vsel %vm496, %v707, 0.0
        %709 = vadd.xlane.f32.xlu0 %v708
        %v710 = vpop.xlane.xlu0 %709
        %v711 = vrcp.pop %v710
        %v712 = vmul.f32 %v707, %v711
        %v713 = vpack.c.bf16 %v712, %v712
        %714 = vrot.lane.b32.xlu0 %v493, 40
        %v715 = vpop.permute.xlu0 %714
        %v717 = vsel %vm496, %v713, 0
        %v720 = vsel %vm533, %v715, 0
        %722 = vmatpush.bf16.msra.mxu0 0
        %723 = vmatpush.bf16.msra.mxu0 0
        %724 = vmatpush.bf16.msra.mxu0 0
        %725 = vmatpush.bf16.msra.mxu0 0
        %726 = vmatpush.bf16.msra.mxu0 0
        %727 = vmatpush.bf16.msra.mxu0 0
        %728 = vmatpush.bf16.msra.mxu0 0
        %729 = vmatpush.bf16.msra.mxu0 %v720
        %730 = vmatmul.bf16.gmra.mxu0 %v717
        %v731 = vpop.f32.mrf.mxu0
        %v732 = vadd.f32 0.0, %v731
        %v733 = vpop.f32.mrf.mxu0
        %734 = vdwg.mxu0
        %v735 = vpack.c.bf16 %v732, %v732
        %737 = vrot.lane.b32.xlu0 %v735, 24
        %v738 = vpop.permute.xlu0 %737
        %vm740 = vcmask 257216
        %741 = vst.msk [vmem:[#allocation2] sm:$0xf] %vm740, %v738
        %v742 = vld [vmem:[#allocation2] sm:$0xf]
        %v743 = vld [vmem:[%s2] sm:$0xf]
        %v744 = vld [vmem:[%s2 + $0x4] sm:$0xf]
        %v745 = vld [vmem:[%s2 + $0x8] sm:$0xf]
        %v746 = vld [vmem:[%s2 + $0xc] sm:$0xf]
        %v751 = vunpack.c.l.b16 %v743
        %v752 = vunpack.c.l.b16 %v744
        %v753 = vunpack.c.l.b16 %v745
        %v754 = vunpack.c.l.b16 %v746
        %v755 = vpack.c.b16 %v752, %v751
        %v756 = vpack.c.b16 %v754, %v753
        %v760 = vsel %vm411, %v742, 0
        %762 = vmatpush.bf16.msra.mxu0 0
        %763 = vmatpush.bf16.msra.mxu0 0
        %764 = vmatpush.bf16.msra.mxu0 0
        %765 = vmatpush.bf16.msra.mxu0 0
        %766 = vmatpush.bf16.msra.mxu0 0
        %767 = vmatpush.bf16.msra.mxu0 0
        %768 = vmatpush.bf16.msra.mxu0 %v756
        %769 = vmatpush.bf16.msra.mxu0 %v755
        %770 = vmatmul.bf16.gmra.mxu0 %v760
        %v771 = vpop.f32.mrf.mxu0
        %v772 = vadd.f32 0.0, %v771
        %v773 = vpop.f32.mrf.mxu0
        %774 = vdwg.mxu0
        %v775 = vadd.f32 %v410, %v772
        %v776 = vld [vmem:[%s3] sm:$0x1]
        %v778 = vperm.slane %v776, 0
        %v780 = vadd.f32 %v775, %v778
        %v781 = vsel %vm411, %v780, 0.0
        %782 = vadd.xlane.f32.xlu0 %v781
        %v783 = vpop.xlane.xlu0 %782
        %v784 = vmul.f32 %v783, %v421
        %v785 = vsub.f32 %v780, %v784
        %v786 = vmul.f32 %v785, %v785
        %v787 = vsel %vm411, %v786, 0.0
        %788 = vadd.xlane.f32.xlu0 %v787
        %v789 = vpop.xlane.xlu0 %788
        %v790 = vmul.f32 %v789, %v421
        %v791 = vadd.f32 %v790, 1e-05
        %v792 = vrsqrt.pop %v791
        %v793 = vmul.f32 %v792, %v791
        %v794 = vmul.f32 %v793, %v792
        %v795 = vmul.f32 0.5, %v794
        %v796 = vsub.f32 1.5, %v795
        %v797 = vmul.f32 %v792, %v796
        %vm798 = vweird.f32 %v791
        %vm799 = vweird.f32 %v792
        %vm800 = vmor %vm798, %vm799
        %v801 = vsel %vm800, %v792, %v797
        %v802 = vmul.f32 %v785, %v801
        %v803 = vld [vmem:[%s6] sm:$0x1]
        %v805 = vperm.slane %v803, 0
        %v807 = vmul.f32 %v802, %v805
        %v808 = vld [vmem:[%s7] sm:$0x1]
        %v810 = vperm.slane %v808, 0
        %v812 = vadd.f32 %v807, %v810
        %v813 = vpack.c.bf16 %v812, %v812
        %v814 = vld [vmem:[%s8] sm:$0xf]
        %v815 = vld [vmem:[%s8 + $0x4] sm:$0xf]
        %v816 = vld [vmem:[%s8 + $0x8] sm:$0xf]
        %v817 = vld [vmem:[%s8 + $0xc] sm:$0xf]
        %v818 = vld [vmem:[%s9] sm:$0x1]
        %v820 = vperm.slane %v818, 0
        %v826 = vunpack.c.l.b16 %v814
        %v827 = vunpack.c.l.b16 %v815
        %v828 = vunpack.c.l.b16 %v816
        %v829 = vunpack.c.l.b16 %v817
        %v830 = vpack.c.b16 %v827, %v826
        %v831 = vpack.c.b16 %v829, %v828
        %v835 = vsel %vm411, %v813, 0
        %837 = vmatpush.bf16.msra.mxu0 0
        %838 = vmatpush.bf16.msra.mxu0 0
        %839 = vmatpush.bf16.msra.mxu0 0
        %840 = vmatpush.bf16.msra.mxu0 0
        %841 = vmatpush.bf16.msra.mxu0 0
        %842 = vmatpush.bf16.msra.mxu0 0
        %843 = vmatpush.bf16.msra.mxu0 %v831
        %844 = vmatpush.bf16.msra.mxu0 %v830
        %845 = vmatmul.bf16.gmra.mxu0 %v835
        %v846 = vpop.f32.mrf.mxu0
        %v847 = vadd.f32 %v820, %v846
        %v848 = vpop.f32.mrf.mxu0
        %849 = vdwg.mxu0
        %v850 = vmax.f32 %v847, 0.0
        %v851 = vpack.c.bf16 %v850, %v850
        %v852 = vld [vmem:[%s10] sm:$0xf]
        %v853 = vld [vmem:[%s10 + $0x4] sm:$0xf]
        %v854 = vld [vmem:[%s10 + $0x8] sm:$0xf]
        %v855 = vld [vmem:[%s10 + $0xc] sm:$0xf]
        %v856 = vld [vmem:[%s10 + $0x10] sm:$0xf]
        %v857 = vld [vmem:[%s10 + $0x14] sm:$0xf]
        %v858 = vld [vmem:[%s10 + $0x18] sm:$0xf]
        %v859 = vld [vmem:[%s10 + $0x1c] sm:$0xf]
        %v860 = vld [vmem:[%s10 + $0x20] sm:$0xf]
        %v861 = vld [vmem:[%s10 + $0x24] sm:$0xf]
        %v862 = vld [vmem:[%s10 + $0x28] sm:$0xf]
        %v863 = vld [vmem:[%s10 + $0x2c] sm:$0xf]
        %v864 = vld [vmem:[%s10 + $0x30] sm:$0xf]
        %v865 = vld [vmem:[%s10 + $0x34] sm:$0xf]
        %v866 = vld [vmem:[%s10 + $0x38] sm:$0xf]
        %v867 = vld [vmem:[%s10 + $0x3c] sm:$0xf]
        %v868 = vld [vmem:[%s11] sm:$0x1]
        %v870 = vperm.slane %v868, 0
        %v888 = vunpack.c.l.b16 %v852
        %v889 = vunpack.c.l.b16 %v853
        %v890 = vunpack.c.l.b16 %v854
        %v891 = vunpack.c.l.b16 %v855
        %v892 = vunpack.c.l.b16 %v856
        %v893 = vunpack.c.l.b16 %v857
        %v894 = vunpack.c.l.b16 %v858
        %v895 = vunpack.c.l.b16 %v859
        %v896 = vunpack.c.l.b16 %v860
        %v897 = vunpack.c.l.b16 %v861
        %v898 = vunpack.c.l.b16 %v862
        %v899 = vunpack.c.l.b16 %v863
        %v900 = vunpack.c.l.b16 %v864
        %v901 = vunpack.c.l.b16 %v865
        %v902 = vunpack.c.l.b16 %v866
        %v903 = vunpack.c.l.b16 %v867
        %v904 = vpack.c.b16 %v889, %v888
        %v905 = vpack.c.b16 %v891, %v890
        %v906 = vpack.c.b16 %v893, %v892
        %v907 = vpack.c.b16 %v895, %v894
        %v908 = vpack.c.b16 %v897, %v896
        %v909 = vpack.c.b16 %v899, %v898
        %v910 = vpack.c.b16 %v901, %v900
        %v911 = vpack.c.b16 %v903, %v902
        %920 = vmatpush.bf16.msra.mxu0 %v911
        %921 = vmatpush.bf16.msra.mxu0 %v910
        %922 = vmatpush.bf16.msra.mxu0 %v909
        %923 = vmatpush.bf16.msra.mxu0 %v908
        %924 = vmatpush.bf16.msra.mxu0 %v907
        %925 = vmatpush.bf16.msra.mxu0 %v906
        %926 = vmatpush.bf16.msra.mxu0 %v905
        %927 = vmatpush.bf16.msra.mxu0 %v904
        %928 = vmatmul.bf16.gmra.mxu0 %v851
        %v929 = vpop.f32.mrf.mxu0
        %v930 = vadd.f32 %v870, %v929
        %v931 = vpop.f32.mrf.mxu0
        %932 = vdwg.mxu0
        %v933 = vadd.f32 %v780, %v930
        %934 = vst.msk [vmem:[%s404] sm:$0xff] %vm411, %v933
        %s935 = sand.u32 %s291, 1
        %s936 = scalar_lea.sflag [#allocation4], %s935
        %s937 = sand.u32 %s291, 1
        %s938 = smul.addr %s937, 8
        %s939 = scalar_lea.vmem [#allocation3], %s938
        // Predicated region
        $region69: #{tpu_custom_call.1} parent=67 // pred_check
          %p940 = pneg %p301
        $region70: #{tpu_custom_call.1} parent=67 // pred_check_branch
          %942 = sbr.rel (%p940) target = $region72
        $region71: #{tpu_custom_call.1} parent=67 // pred_region
          %944 = vsyncadd %s936, 0
          %s945 = smul.addr %s26, 8
          %s946 = scalar_lea.hbm %s12, %s945
          %s948 = sshll.u32 %s939, 4
          %s949 = int_to_ptr.vmem [resolvable:$true] %s948
          %s950 = sshll.u32 %s946, 4
          %s951 = int_to_ptr.hbm [resolvable:$true] %s950
          %953 = dma.vmem_to_hbm [thread:$0]  %s949, 128, %s951, %s936
        $region72: #{tpu_custom_call.1} parent=67 // pred_fallthru
          _
      $region68: #{tpu_custom_call.1} parent=5 // pred_fallthru
        _
      %p954 = scmp.le.s32.totalorder 2, %s21
      // Predicated region
      $region73: #{tpu_custom_call.1} parent=5 // pred_check
        %p955 = pneg %p954
      $region74: #{tpu_custom_call.1} parent=5 // pred_check_branch
        %957 = sbr.rel (%p955) target = $region76
      $region75: #{tpu_custom_call.1} parent=5 // pred_region
        %s958 = ssub.s32 %s21, 2
        // Predicated region
        $region77: #{tpu_custom_call.1} parent=75 // pred_check
          %p959 = pneg %p307
        $region78: #{tpu_custom_call.1} parent=75 // pred_check_branch
          %961 = sbr.rel (%p959) target = $region80
        $region79: #{tpu_custom_call.1} parent=75 // pred_region
          %s962 = sand.u32 %s292, 1
          %s963 = scalar_lea.sflag [#allocation4], %s962
          %s964 = sand.u32 %s292, 1
          %s965 = smul.addr %s964, 8
          %s966 = scalar_lea.vmem [#allocation3], %s965
          %968 = dma.done %s963, 128
        $region80: #{tpu_custom_call.1} parent=75 // pred_fallthru
          _
      $region76: #{tpu_custom_call.1} parent=5 // pred_fallthru
        _
    $region6: #{tpu_custom_call.1} parent=1 // loop_footer
      %s25 = sadd.s32 1, %s21
    $region7: #{tpu_custom_call.1} parent=1 // loop_footer_branch
      %20 = sbr.rel target = $region3
    $region8: #{tpu_custom_call.1} parent=1 // loop_exit
      _
    %969 = vsyncpa [#allocation4], 1
    %s970 = scalar_lea.sflag [#allocation4], 1
    %971 = vsyncpa %s970, 1

</llo_original>
